<compile_context>
chip_gen: v5e
topology: v5e:2x2
jax: 0.10.0
libtpu: 0.0.40
codegen_flags: <defaults>
</compile_context>

<pallas_src>
import functools

import jax
import jax.numpy as jnp
from jax import lax
from jax.experimental import pallas as pl
from jax.experimental.pallas import tpu as pltpu


def _round_up(x, m):
    return (x + m - 1) // m * m


def _vmem_estimate(ti, tj, tk, n_pad, itemsize):
    """Rough per-step VMEM footprint in bytes (double-buffered blocks, score
    accumulator + live (ti, tj) f32 temporaries, carried scratch)."""
    operands = 2 * (ti + tj) * tk * itemsize            # im / s blocks, 2 buffers
    diags = 2 * (8 * tj + ti * 128) * 4                 # diag row / col blocks
    score_tmps = 4 * ti * tj * 4                        # acc + live temporaries
    carried = (8 * n_pad + ti * 128 + 16 * tj + 128) * 4
    return operands + diags + score_tmps + carried


def _select_tiling(n, d, itemsize, budget, tile=None, tile_k=None):
    """Pick (tile_i, tile_j, tile_k, n_pad, d_pad) under a VMEM budget."""
    sub = max(8, 32 // itemsize)            # dtype-correct sublane multiple
    d128 = _round_up(d, 128)
    n_min = _round_up(n, sub)

    if tile_k is not None:
        k_cands = [min(_round_up(int(tile_k), 128), d128)]
    else:
        k_cands = [d128] + [k for k in (2048, 1024, 512) if k < d128]

    if tile is not None:
        t = _round_up(int(tile), sub)
        if t < n_min:                        # multiple row blocks -> 128-aligned
            t = _round_up(t, 128)
        t = min(t, n_min)
        pairs = [(t, t, _round_up(n, t))]
    else:
        pairs = []
        if n_min <= 1024:                    # single (i, j) block: zero re-streaming
            pairs.append((n_min, n_min, n_min))
        for t in (512, 256, 128):
            if t >= n_min:
                continue
            npd = _round_up(n, t)
            if npd <= 4096:                  # resident s (single column block)
                pairs.append((t, npd, npd))
            pairs.append((t, t, npd))
        if not pairs:
            pairs = [(n_min, n_min, n_min)]

    for ti, tj, npd in pairs:
        for tk in k_cands:
            if tj > ti and tk != d128:
                continue                     # resident-s only pays with one K block
            dpd = _round_up(d, tk)
            if _vmem_estimate(ti, tj, tk, npd, itemsize) <= budget:
                return ti, tj, tk, npd, dpd

    # Fallback: smallest candidates.
    ti, tj, npd = pairs[-1]
    tk = min(k_cands)
    return ti, tj, tk, npd, _round_up(d, tk)


def _triplet_kernel(diag_row_ref, diag_col_ref, im_ref, s_ref, out_ref,
                    *scratch, margin, max_violation, i2t, n_valid, padded,
                    tile_i, tile_j, k_tiled):
    i_blk = pl.program_id(0)          # row block of the score matrix (outer)
    j_blk = pl.program_id(1)          # column block (middle)
    k_blk = pl.program_id(2)          # contraction block (innermost)
    nb_i = pl.num_programs(0)
    nb_j = pl.num_programs(1)
    nb_k = pl.num_programs(2)

    idx = 0
    score_acc = None
    if k_tiled:
        score_acc = scratch[idx]; idx += 1
    if max_violation:
        colmax_ref = scratch[idx]; idx += 1                # (nb_j, 1, tile_j)
        rowmax_ref = rowtot_ref = None
        if i2t:
            rowmax_ref = scratch[idx]                      # (tile_i, 1)
            rowtot_ref = scratch[idx + 1]                  # (1, 1)
            idx += 2
    else:
        sum_acc = scratch[idx]; idx += 1                   # (8, tile_j)

    # ---- MXU: partial scores for this (i, j, k) tile (native dtype in,
    #      f32 accumulation, no explicit transpose of s) ----------------------
    prod = lax.dot_general(
        im_ref[...], s_ref[...],
        dimension_numbers=(((1,), (1,)), ((), ())),
        preferred_element_type=jnp.float32)                # (tile_i, tile_j)

    if k_tiled:
        @pl.when(k_blk == 0)
        def _():
            score_acc[...] = prod

        @pl.when(k_blk > 0)
        def _():
            score_acc[...] += prod

    # ---- init of carried accumulators ---------------------------------------
    if max_violation:
        @pl.when(jnp.logical_and(i_blk == 0,
                                 jnp.logical_and(j_blk == 0, k_blk == 0)))
        def _():
            colmax_ref[...] = jnp.zeros_like(colmax_ref)
            if i2t:
                rowtot_ref[...] = jnp.zeros_like(rowtot_ref)
    else:
        @pl.when(jnp.logical_and(j_blk == 0, k_blk == 0))
        def _():
            sum_acc[...] = jnp.zeros_like(sum_acc)

    # ---- finalize the (tile_i, tile_j) score tile at the last K step --------
    @pl.when(k_blk == nb_k - 1)
    def _():
        scores = score_acc[...] if k_tiled else prod

        # keep-mask: the reference always zeroes the diagonal; zero-padded
        # rows / columns are also dropped (static `padded` flag).  Interior
        # tiles simply see an all-True mask.
        row_g = i_blk * tile_i + lax.broadcasted_iota(jnp.int32, (tile_i, 1), 0)
        col_g = j_blk * tile_j + lax.broadcasted_iota(jnp.int32, (1, tile_j), 1)
        keep = row_g != col_g
        if padded:
            keep = jnp.logical_and(
                keep, jnp.logical_and(row_g < n_valid, col_g < n_valid))

        d2 = diag_row_ref[...]                             # (1, tile_j)
        # cost_im is fully reduced before cost_s is built so at most two
        # (tile_i, tile_j) f32 temporaries are live at once.
        cost_im = jnp.where(keep, jnp.maximum(margin + scores - d2, 0.0), 0.0)

        if not max_violation:
            # Plain-sum path: collapse sublane groups with VPU adds only; the
            # final cross-sublane / cross-lane sum happens in the wrapper on a
            # tiny lane-dense output.
            groups = tile_i // 8
            part = jnp.sum(cost_im.reshape(groups, 8, tile_j), axis=0)
            if i2t:
                d1 = diag_col_ref[...]                     # (tile_i, 1)
                cost_s = jnp.where(
                    keep, jnp.maximum(margin + scores - d1, 0.0), 0.0)
                part = part + jnp.sum(cost_s.reshape(groups, 8, tile_j), axis=0)
            sum_acc[...] += part

            # End of this row block's sweep: emit the lane-dense partial block.
            @pl.when(j_blk == nb_j - 1)
            def _():
                out_ref[...] = sum_acc[...]
        else:
            # cost_im.max(dim=0): per-column running max, carried across row
            # blocks in a lane-dense (nb_j, 1, tile_j) scratch (first-axis
            # indexed; no masked strided stores).
            tile_col_max = jnp.max(cost_im, axis=0, keepdims=True)   # (1, tile_j)
            colmax_ref[j_blk] = jnp.maximum(colmax_ref[j_blk], tile_col_max)

            if i2t:
                # cost_s.max(dim=1): completes within the inner column sweep.
                d1 = diag_col_ref[...]
                cost_s = jnp.where(
                    keep, jnp.maximum(margin + scores - d1, 0.0), 0.0)
                tile_row_max = jnp.max(cost_s, axis=1, keepdims=True)  # (tile_i,1)

                @pl.when(j_blk == 0)
                def _():
                    rowmax_ref[...] = tile_row_max

                @pl.when(j_blk > 0)
                def _():
                    rowmax_ref[...] = jnp.maximum(rowmax_ref[...], tile_row_max)

                @pl.when(j_blk == nb_j - 1)
                def _():
                    rowtot_ref[...] += jnp.sum(rowmax_ref[...], axis=0,
                                               keepdims=True)

            # Very last grid step: reduce the running maxima to the scalar loss.
            @pl.when(jnp.logical_and(i_blk == nb_i - 1, j_blk == nb_j - 1))
            def _():
                col_tot = jnp.sum(colmax_ref[...], axis=0)         # (1, tile_j)
                total = jnp.sum(col_tot, axis=1, keepdims=True)    # (1, 1)
                if i2t:
                    total = total + rowtot_ref[...]
                out_ref[...] = total


def triplet_loss(im, s, *, margin=1.0, max_violation=False, i2t=False,
                 tile=None, tile_k=None):
    """Pallas TPU TripletLoss forward.  im: (N, D), s: (N, D) -> scalar f32."""
    n, d = im.shape
    assert s.shape == (n, d), (im.shape, s.shape)
    margin = float(margin)
    max_violation = bool(max_violation)
    i2t = bool(i2t)

    itemsize = jnp.dtype(im.dtype).itemsize

    # Generation-aware VMEM budget (v5e/v6e: 128 MiB physical, v7x: 64 MiB).
    phys_vmem = 64 << 20
    try:
        phys_vmem = int(pltpu.get_tpu_info().vmem_capacity_bytes)
    except Exception:
        pass
    vmem_limit = min((phys_vmem * 3) // 4, 100 << 20)

    tile_i, tile_j, tk, n_pad, d_pad = _select_tiling(
        n, d, itemsize, budget=int(vmem_limit * 0.8), tile=tile, tile_k=tile_k)
    nb_i = n_pad // tile_i
    nb_j = n_pad // tile_j
    nb_k = d_pad // tk
    padded = n_pad != n

    # Diagonal <im_i, s_i> as a cheap O(N*D) f32 row-dot (no N x N masked
    # diagonal extraction on the score matrix).
    diag = jnp.sum(im.astype(jnp.float32) * s.astype(jnp.float32), axis=-1)
    if padded:
        diag = jnp.pad(diag, (0, n_pad - n))
    diag_row = diag.reshape(1, n_pad)
    diag_col = diag.reshape(n_pad, 1)

    if n_pad != n or d_pad != d:
        im = jnp.pad(im, ((0, n_pad - n), (0, d_pad - d)))
        s = jnp.pad(s, ((0, n_pad - n), (0, d_pad - d)))

    kernel = functools.partial(
        _triplet_kernel,
        margin=margin, max_violation=max_violation, i2t=i2t,
        n_valid=n, padded=padded,
        tile_i=tile_i, tile_j=tile_j, k_tiled=nb_k > 1)

    scratch = []
    if nb_k > 1:
        scratch.append(pltpu.VMEM((tile_i, tile_j), jnp.float32))    # score acc
    if max_violation:
        scratch.append(pltpu.VMEM((nb_j, 1, tile_j), jnp.float32))   # col max
        if i2t:
            scratch.append(pltpu.VMEM((tile_i, 1), jnp.float32))     # row max
            scratch.append(pltpu.VMEM((1, 1), jnp.float32))          # row total
    else:
        scratch.append(pltpu.VMEM((8, tile_j), jnp.float32))         # partial sums

    if max_violation:
        out_shape = jax.ShapeDtypeStruct((1, 1), jnp.float32)
        out_spec = pl.BlockSpec((1, 1), lambda i, j, k: (0, 0))
        # Per-column max is carried across row blocks -> i must stay serial.
        sems = ("arbitrary", "arbitrary", "arbitrary")
    else:
        out_shape = jax.ShapeDtypeStruct((nb_i * 8, tile_j), jnp.float32)
        out_spec = pl.BlockSpec((8, tile_j), lambda i, j, k: (i, 0))
        # No cross-row-block carried state -> row blocks may split across TCs.
        sems = ("parallel", "arbitrary", "arbitrary")

    # Advisory cost estimate for XLA's scheduler.
    matmul_flops = 2.0 * n_pad * n_pad * d_pad
    elem_flops = (8.0 if i2t else 4.0) * n_pad * n_pad
    im_bytes = (nb_j if nb_k > 1 else 1) * n_pad * d_pad * itemsize
    s_bytes = (nb_i if (nb_j > 1 or nb_k > 1) else 1) * n_pad * d_pad * itemsize
    cost = pl.CostEstimate(
        flops=int(matmul_flops + elem_flops),
        transcendentals=0,
        bytes_accessed=int(im_bytes + s_bytes + 3 * n_pad * 4))

    out = pl.pallas_call(
        kernel,
        out_shape=out_shape,
        grid_spec=pltpu.PrefetchScalarGridSpec(
            num_scalar_prefetch=0,
            grid=(nb_i, nb_j, nb_k),
            in_specs=[
                pl.BlockSpec((1, tile_j), lambda i, j, k: (0, j)),     # d2
                pl.BlockSpec((tile_i, 1), lambda i, j, k: (i, 0)),     # d1
                pl.BlockSpec((tile_i, tk), lambda i, j, k: (i, k)),    # im rows
                pl.BlockSpec((tile_j, tk), lambda i, j, k: (j, k)),    # s rows
            ],
            out_specs=out_spec,
            scratch_shapes=scratch),
        compiler_params=pltpu.CompilerParams(
            dimension_semantics=sems,
            vmem_limit_bytes=int(vmem_limit)),
        cost_estimate=cost,
    )(diag_row, diag_col, im, s)

    if max_violation:
        return out[0, 0]
    return jnp.sum(out)


def _reference_triplet_loss(im, s, *, margin=1.0, max_violation=False,
                            i2t=False):
    """Plain-JAX reference mirroring the PyTorch module."""
    scores = jnp.dot(im.astype(jnp.float32), s.astype(jnp.float32).T,
                     precision=lax.Precision.HIGHEST)
    diag = jnp.diag(scores)
    d1 = diag[:, None]
    d2 = diag[None, :]
    eye = jnp.eye(scores.shape[0], dtype=bool)
    cost_im = jnp.maximum(margin + scores - d2, 0.0)
    cost_im = jnp.where(eye, 0.0, cost_im)
    if i2t:
        cost_s = jnp.maximum(margin + scores - d1, 0.0)
        cost_s = jnp.where(eye, 0.0, cost_s)
    if max_violation:
        cost_im = jnp.max(cost_im, axis=0)
        if i2t:
            cost_s = jnp.max(cost_s, axis=1)
    loss = jnp.sum(cost_im)
    if i2t:
        loss = loss + jnp.sum(cost_s)
    return loss


if __name__ == "__main__":
    key = jax.random.PRNGKey(0)
    k_im, k_s, k_im2, k_s2 = jax.random.split(key, 4)

    # Module-default config at a small shape (batch=8, hidden=32),
    # single-block grid, both reduction modes.
    N, D = 8, 32
    im = jax.random.normal(k_im, (N, D), dtype=jnp.float32)
    s = jax.random.normal(k_s, (N, D), dtype=jnp.float32)
    for mv, i2t_flag in ((False, False), (True, True)):
        got = jax.block_until_ready(
            triplet_loss(im, s, margin=1.0, max_violation=mv, i2t=i2t_flag))
        want = _reference_triplet_loss(im, s, margin=1.0, max_violation=mv,
                                       i2t=i2t_flag)
        assert jnp.allclose(got, want, rtol=2e-3, atol=1e-2), (
            mv, i2t_flag, got, want)

    # Multi-tile + padding (3x3 row/column grid, N 300->384, D 200->256)
    # across all flag combinations.
    N2, D2 = 300, 200
    im2 = jax.random.normal(k_im2, (N2, D2), dtype=jnp.float32)
    s2 = jax.random.normal(k_s2, (N2, D2), dtype=jnp.float32)
    for mv in (False, True):
        for i2t_flag in (False, True):
            got = jax.block_until_ready(
                triplet_loss(im2, s2, margin=1.0, max_violation=mv,
                             i2t=i2t_flag, tile=128))
            want = _reference_triplet_loss(im2, s2, margin=1.0,
                                           max_violation=mv, i2t=i2t_flag)
            assert jnp.allclose(got, want, rtol=2e-3, atol=1e-2), (
                mv, i2t_flag, got, want)

    # Exercise the K-tiled (split contraction) path explicitly.
    for mv, i2t_flag in ((False, True), (True, True)):
        got = jax.block_until_ready(
            triplet_loss(im2, s2, margin=1.0, max_violation=mv,
                         i2t=i2t_flag, tile=128, tile_k=128))
        want = _reference_triplet_loss(im2, s2, margin=1.0,
                                       max_violation=mv, i2t=i2t_flag)
        assert jnp.allclose(got, want, rtol=2e-3, atol=1e-2), (
            mv, i2t_flag, got, want)

    print("KERNEL_OK")
</pallas_src>

<mosaic_0001>
module attributes {stable_mosaic.version = 11 : i64} {
  func.func @_triplet_kernel(%arg0: i32, %arg1: i32, %arg2: i32, %arg3: memref<1x8xf32, #tpu.memory_space<vmem>>, %arg4: memref<8x1xf32, #tpu.memory_space<vmem>>, %arg5: memref<8x128xf32, #tpu.memory_space<vmem>>, %arg6: memref<8x128xf32, #tpu.memory_space<vmem>>, %arg7: memref<8x8xf32, #tpu.memory_space<vmem>>, %arg8: memref<8x8xf32, #tpu.memory_space<vmem>>) attributes {dimension_semantics = [#tpu.dimension_semantics<parallel>, #tpu.dimension_semantics<arbitrary>, #tpu.dimension_semantics<arbitrary>], iteration_bounds = array<i64: 1, 1, 1>, scalar_prefetch = 0 : i64, scratch_operands = 1 : i64, tpu.core_type = #tpu.core_type<tc>, window_params = [{transform_indices = @transform_0, window_bounds = array<i64: 1, 8>}, {transform_indices = @transform_1, window_bounds = array<i64: 8, 1>}, {transform_indices = @transform_2, window_bounds = array<i64: 8, 128>}, {transform_indices = @transform_3, window_bounds = array<i64: 8, 128>}, {transform_indices = @transform_4, window_bounds = array<i64: 8, 8>}]} {
    %c0 = arith.constant 0 : index
    %c0_0 = arith.constant 0 : index
    %0 = vector.load %arg5[%c0, %c0_0] : memref<8x128xf32, #tpu.memory_space<vmem>>, vector<8x128xf32>
    %c0_1 = arith.constant 0 : index
    %c0_2 = arith.constant 0 : index
    %1 = vector.load %arg6[%c0_1, %c0_2] : memref<8x128xf32, #tpu.memory_space<vmem>>, vector<8x128xf32>
    %cst = arith.constant dense<0.000000e+00> : vector<8x8xf32>
    %2 = tpu.matmul %0, %1, %cst {dimension_numbers = #tpu.dot_dimension_numbers<[1], [1], [0], [0], [0, 0, 1, 0], [], []>} : vector<8x128xf32>, vector<8x128xf32>, vector<8x8xf32> -> vector<8x8xf32>
    %c0_i32 = arith.constant 0 : i32
    %3 = arith.cmpi eq, %arg1, %c0_i32 : i32
    %c0_i32_3 = arith.constant 0 : i32
    %4 = arith.cmpi eq, %arg2, %c0_i32_3 : i32
    %5 = arith.andi %3, %4 : i1
    %6 = arith.extui %5 : i1 to i32
    %c0_i32_4 = arith.constant 0 : i32
    %7 = arith.cmpi ne, %6, %c0_i32_4 : i32
    scf.if %7 {
      %cst_7 = arith.constant 0.000000e+00 : f32
      %11 = vector.broadcast %cst_7 : f32 to vector<8x8xf32>
      %c0_8 = arith.constant 0 : index
      %c0_9 = arith.constant 0 : index
      %12 = vector.load %arg8[%c0_8, %c0_9] : memref<8x8xf32, #tpu.memory_space<vmem>>, vector<8x8xf32>
      tpu.vector_store %arg8[%c0_8, %c0_9], %11 {strides = array<i32>} : memref<8x8xf32, #tpu.memory_space<vmem>>, vector<8x8xf32>,
    } else {
    }
    %c0_i32_5 = arith.constant 0 : i32
    %8 = arith.cmpi eq, %arg2, %c0_i32_5 : i32
    %9 = arith.extui %8 : i1 to i32
    %c0_i32_6 = arith.constant 0 : i32
    %10 = arith.cmpi ne, %9, %c0_i32_6 : i32
    scf.if %10 {
      %c8_i32 = arith.constant 8 : i32
      %11 = arith.muli %arg0, %c8_i32 : i32
      %12 = tpu.iota {dimensions = array<i32: 0>} : vector<8x1xi32>
      %13 = vector.broadcast %11 : i32 to vector<8x1xi32>
      %14 = arith.addi %13, %12 : vector<8x1xi32>
      %c8_i32_7 = arith.constant 8 : i32
      %15 = arith.muli %arg1, %c8_i32_7 : i32
      %16 = tpu.iota {dimensions = array<i32: 1>} : vector<1x8xi32>
      %17 = vector.broadcast %15 : i32 to vector<1x8xi32>
      %18 = arith.addi %17, %16 : vector<1x8xi32>
      %19 = vector.broadcast %14 : vector<8x1xi32> to vector<8x8xi32>
      %20 = vector.broadcast %18 : vector<1x8xi32> to vector<8x8xi32>
      %21 = arith.cmpi ne, %19, %20 : vector<8x8xi32>
      %c0_8 = arith.constant 0 : index
      %c0_9 = arith.constant 0 : index
      %22 = vector.load %arg3[%c0_8, %c0_9] : memref<1x8xf32, #tpu.memory_space<vmem>>, vector<1x8xf32>
      %cst_10 = arith.constant 1.000000e+00 : f32
      %23 = vector.broadcast %cst_10 : f32 to vector<8x8xf32>
      %24 = arith.addf %23, %2 : vector<8x8xf32>
      %25 = vector.broadcast %22 : vector<1x8xf32> to vector<8x8xf32>
      %26 = arith.subf %24, %25 : vector<8x8xf32>
      %cst_11 = arith.constant 0.000000e+00 : f32
      %27 = vector.broadcast %cst_11 : f32 to vector<8x8xf32>
      %28 = arith.maximumf %26, %27 : vector<8x8xf32>
      %cst_12 = arith.constant 0.000000e+00 : f32
      %29 = vector.broadcast %cst_12 : f32 to vector<8x8xf32>
      %30 = arith.select %21, %28, %29 : vector<8x8xi1>, vector<8x8xf32>
      %31 = vector.shape_cast %30 : vector<8x8xf32> to vector<1x8x8xf32>
      %cst_13 = arith.constant dense<0.000000e+00> : vector<8x8xf32>
      %32 = vector.multi_reduction <add>, %31, %cst_13 [0] : vector<1x8x8xf32> to vector<8x8xf32>
      %c0_14 = arith.constant 0 : index
      %c0_15 = arith.constant 0 : index
      %33 = vector.load %arg8[%c0_14, %c0_15] : memref<8x8xf32, #tpu.memory_space<vmem>>, vector<8x8xf32>
      %34 = arith.addf %33, %32 : vector<8x8xf32>
      %c0_16 = arith.constant 0 : index
      %c0_17 = arith.constant 0 : index
      %35 = vector.load %arg8[%c0_16, %c0_17] : memref<8x8xf32, #tpu.memory_space<vmem>>, vector<8x8xf32>
      tpu.vector_store %arg8[%c0_16, %c0_17], %34 {strides = array<i32>} : memref<8x8xf32, #tpu.memory_space<vmem>>, vector<8x8xf32>,
      %c0_i32_18 = arith.constant 0 : i32
      %36 = arith.cmpi eq, %arg1, %c0_i32_18 : i32
      %37 = arith.extui %36 : i1 to i32
      %c0_i32_19 = arith.constant 0 : i32
      %38 = arith.cmpi ne, %37, %c0_i32_19 : i32
      scf.if %38 {
        %c0_20 = arith.constant 0 : index
        %c0_21 = arith.constant 0 : index
        %39 = vector.load %arg8[%c0_20, %c0_21] : memref<8x8xf32, #tpu.memory_space<vmem>>, vector<8x8xf32>
        %c0_22 = arith.constant 0 : index
        %c0_23 = arith.constant 0 : index
        %40 = vector.load %arg7[%c0_22, %c0_23] : memref<8x8xf32, #tpu.memory_space<vmem>>, vector<8x8xf32>
        tpu.vector_store %arg7[%c0_22, %c0_23], %39 {strides = array<i32>} : memref<8x8xf32, #tpu.memory_space<vmem>>, vector<8x8xf32>,
      } else {
      }
    } else {
    }
    return
  }
  func.func @transform_0(%arg0: i32, %arg1: i32, %arg2: i32) -> (i32, i32) {
    %c0_i32 = arith.constant 0 : i32
    %c0_i32_0 = arith.constant 0 : i32
    return %c0_i32, %arg1 : i32, i32
  }
  func.func @transform_1(%arg0: i32, %arg1: i32, %arg2: i32) -> (i32, i32) {
    %c0_i32 = arith.constant 0 : i32
    %c0_i32_0 = arith.constant 0 : i32
    return %arg0, %c0_i32 : i32, i32
  }
  func.func @transform_2(%arg0: i32, %arg1: i32, %arg2: i32) -> (i32, i32) {
    %c0_i32 = arith.constant 0 : i32
    return %arg0, %arg2 : i32, i32
  }
  func.func @transform_3(%arg0: i32, %arg1: i32, %arg2: i32) -> (i32, i32) {
    %c0_i32 = arith.constant 0 : i32
    return %arg1, %arg2 : i32, i32
  }
  func.func @transform_4(%arg0: i32, %arg1: i32, %arg2: i32) -> (i32, i32) {
    %c0_i32 = arith.constant 0 : i32
    %c0_i32_0 = arith.constant 0 : i32
    return %arg0, %c0_i32 : i32, i32
  }
}

</mosaic_0001>

<llo_original>
// kernel: tpu_custom_call.1
$region0: #{tpu_custom_call.1}
  #allocation0 [shape = 'u32[]', space=smem, size = 0x4, offset = 0x4, fixed_abs, tag = 'smem constant byte address 0x4 - core index']
  #allocation1 [shape = 'u32[72,128]{1,0:T(1,128)}', space=vmem, size = 0x9000, scoped, tag = 'internal scratch']
  #allocation2 [shape = 'f32[8,8]{1,0:T(8,128)}', space=vmem, size = 0x1000, scoped, tag = 'scratch operand']
  %s0 = inlined_call_operand.vmem [shape: f32[1,8], index: 0, kind: input, shape index: {}]
  %s1 = inlined_call_operand.vmem [shape: f32[8,1], index: 1, kind: input, shape index: {}]
  %s2 = inlined_call_operand.vmem [shape: f32[8,128], index: 2, kind: input, shape index: {}]
  %s3 = inlined_call_operand.hbm [shape: f32[8,128], index: 3, kind: input, shape index: {}]
  %s4 = inlined_call_operand.hbm [shape: f32[8,8], index: 4, kind: output, shape index: {}]
  %s5 = sld [smem:[#allocation0]]
  $region42: #{tpu_custom_call.1} parent=0
    _
  %s7 = ssub.s32 1, %s5
  %s8 = scalar_select 0, %s7, %s5
  $region1: #{tpu_custom_call.1} parent=0
    #allocation3 [shape = 'u8[4096]{0}', space=vmem, size = 0x1000, scoped, tag = 'input window, operand 3, single buffered']
    #allocation4 [shape = 's32[1]{0}', space=sflag, size = 0x4, scoped, tag = 'scoped memory for tpu_custom_call.1']
    #allocation5 [shape = 's32[1]{0}', space=sflag, size = 0x4, scoped, tag = 'scoped memory for tpu_custom_call.1']
    #allocation6 [shape = 'u8[4096]{0}', space=vmem, size = 0x1000, scoped, tag = 'output window, operand 0, single buffered']
    %9 = vsyncpa [#allocation4], 0
    %10 = vsyncpa [#allocation5], 0
    // Predicated region
    $region2: #{tpu_custom_call.1} parent=1 // pred_check
      _
    $region3: #{tpu_custom_call.1} parent=1 // pred_check_branch
      %12 = sbr.rel (0) target = $region5
    $region4: #{tpu_custom_call.1} parent=1 // pred_region
      _
    $region5: #{tpu_custom_call.1} parent=1 // pred_fallthru
      _
    // Predicated region
    $region6: #{tpu_custom_call.1} parent=1 // pred_check
      _
    $region7: #{tpu_custom_call.1} parent=1 // pred_check_branch
      %14 = sbr.rel (0) target = $region9
    $region8: #{tpu_custom_call.1} parent=1 // pred_region
      _
    $region9: #{tpu_custom_call.1} parent=1 // pred_fallthru
      _
    // Predicated region
    $region10: #{tpu_custom_call.1} parent=1 // pred_check
      _
    $region11: #{tpu_custom_call.1} parent=1 // pred_check_branch
      %16 = sbr.rel (0) target = $region13
    $region12: #{tpu_custom_call.1} parent=1 // pred_region
      _
    $region13: #{tpu_custom_call.1} parent=1 // pred_fallthru
      _
    // Predicated region
    $region14: #{tpu_custom_call.1} parent=1 // pred_check
      _
    $region15: #{tpu_custom_call.1} parent=1 // pred_check_branch
      %18 = sbr.rel (0) target = $region17
    $region16: #{tpu_custom_call.1} parent=1 // pred_region
      %20 = vsyncadd [#allocation4], 0
      %s22 = sshll.u32 %s3, 4
      %s23 = int_to_ptr.hbm [resolvable:$true] %s22
      %s24 = sshll.u32 [#allocation3], 4
      %s25 = int_to_ptr.vmem [resolvable:$true] %s24
      %27 = dma.hbm_to_vmem [thread:$0]  %s23, 128, %s25, [#allocation4]
    $region17: #{tpu_custom_call.1} parent=1 // pred_fallthru
      _
    // Predicated region
    $region18: #{tpu_custom_call.1} parent=1 // pred_check
      _
    $region19: #{tpu_custom_call.1} parent=1 // pred_check_branch
      %29 = sbr.rel (0) target = $region21
    $region20: #{tpu_custom_call.1} parent=1 // pred_region
      %31 = dma.done [#allocation4], 128
    $region21: #{tpu_custom_call.1} parent=1 // pred_fallthru
      _
    %v32 = vld [vmem:[%s2] sm:$0xff]
    %v33 = vld [vmem:[#allocation3] sm:$0xff]
    %p34 = scmp.eq.s32.totalorder 0, 0
    %p35 = scmp.eq.s32.totalorder 0, 0
    %p36 = pnand %p34, %p35
    %p37 = pneg %p36
    // Predicated region
    $region22: #{tpu_custom_call.1} parent=1 // pred_check
      _
    $region23: #{tpu_custom_call.1} parent=1 // pred_check_branch
      %39 = sbr.rel (%p36) target = $region25
    $region24: #{tpu_custom_call.1} parent=1 // pred_region
      %vm40 = vcmask 64512
      %41 = vst.msk [vmem:[#allocation2] sm:$0xff] %vm40, 0.0
    $region25: #{tpu_custom_call.1} parent=1 // pred_fallthru
      _
    // Predicated region
    $region26: #{tpu_custom_call.1} parent=1 // pred_check
      %p42 = pneg %p35
    $region27: #{tpu_custom_call.1} parent=1 // pred_check_branch
      %44 = sbr.rel (%p42) target = $region29
    $region28: #{tpu_custom_call.1} parent=1 // pred_region
      %s45 = smul.u32 0, 8
      %v46 = vlaneseq
      %v47 = vshrl.u32 %v46, 7
      %v48 = vstv %s45
      %v49 = vadd.s32 %v48, %v47
      %s50 = smul.u32 0, 8
      %v51 = vlaneseq
      %v52 = vand.u32 %v51, 127
      %v53 = vstv %s50
      %v54 = vadd.s32 %v53, %v52
      %vm55 = vcmp.ne.s32.totalorder %v49, %v54
      %v56 = vld [vmem:[%s0] sm:$0x1]
      %57 = vmatpush.xpose.msra.mxu0 0.0
      %58 = vmatpush.xpose.msra.mxu0 0.0
      %59 = vmatpush.xpose.msra.mxu0 0.0
      %60 = vmatpush.xpose.msra.mxu0 0.0
      %61 = vmatpush.xpose.msra.mxu0 0.0
      %62 = vmatpush.xpose.msra.mxu0 0.0
      %63 = vmatpush.xpose.msra.mxu0 0.0
      %64 = vmatpush.xpose.msra.mxu0 0.0
      %65 = vmatpush.xpose.msra.mxu0 0.0
      %66 = vmatpush.xpose.msra.mxu0 0.0
      %67 = vmatpush.xpose.msra.mxu0 0.0
      %68 = vmatpush.xpose.msra.mxu0 0.0
      %69 = vmatpush.xpose.msra.mxu0 0.0
      %70 = vmatpush.xpose.msra.mxu0 0.0
      %71 = vmatpush.xpose.msra.mxu0 0.0
      %72 = vmatpush.xpose.msra.mxu0 %v33
      %73 = vmatmul.f32.gmra.mxu0 %v32
      %v74 = vpop.f32.mrf.mxu0
      %v75 = vadd.f32 1.0, %v74
      %76 = vdwg.mxu0
      %v78 = vperm.slane %v56, 0
      %v80 = vsub.f32 %v75, %v78
      %v81 = vmax.f32 %v80, 0.0
      %v82 = vsel %vm55, %v81, 0.0
      %v83 = vadd.f32 %v82, 0.0
      %v84 = vld [vmem:[#allocation2] sm:$0xff]
      %v85 = vadd.f32 %v84, %v83
      %vm86 = vcmask 64512
      %87 = vst.msk [vmem:[#allocation2] sm:$0xff] %vm86, %v85
      // Predicated region
      $region30: #{tpu_custom_call.1} parent=28 // pred_check
        %p88 = pneg %p34
      $region31: #{tpu_custom_call.1} parent=28 // pred_check_branch
        %90 = sbr.rel (%p88) target = $region33
      $region32: #{tpu_custom_call.1} parent=28 // pred_region
        %v91 = vld [vmem:[#allocation2] sm:$0xff]
        %92 = vst.msk [vmem:[#allocation6] sm:$0xff] %vm86, %v91
      $region33: #{tpu_custom_call.1} parent=28 // pred_fallthru
        _
    $region29: #{tpu_custom_call.1} parent=1 // pred_fallthru
      _
    // Predicated region
    $region34: #{tpu_custom_call.1} parent=1 // pred_check
      _
    $region35: #{tpu_custom_call.1} parent=1 // pred_check_branch
      %94 = sbr.rel (0) target = $region37
    $region36: #{tpu_custom_call.1} parent=1 // pred_region
      %96 = vsyncadd [#allocation5], 0
      %s98 = sshll.u32 [#allocation6], 4
      %s99 = int_to_ptr.vmem [resolvable:$true] %s98
      %s100 = sshll.u32 %s4, 4
      %s101 = int_to_ptr.hbm [resolvable:$true] %s100
      %103 = dma.vmem_to_hbm [thread:$0]  %s99, 128, %s101, [#allocation5]
    $region37: #{tpu_custom_call.1} parent=1 // pred_fallthru
      _
    // Predicated region
    $region38: #{tpu_custom_call.1} parent=1 // pred_check
      _
    $region39: #{tpu_custom_call.1} parent=1 // pred_check_branch
      %105 = sbr.rel (0) target = $region41
    $region40: #{tpu_custom_call.1} parent=1 // pred_region
      %107 = dma.done [#allocation5], 128
    $region41: #{tpu_custom_call.1} parent=1 // pred_fallthru
      _
    %108 = vsyncpa [#allocation4], 1
    %109 = vsyncpa [#allocation5], 1

</llo_original>
